<compile_context>
chip_gen: v6e
topology: v6e:2x2x1
jax: 0.10.0
libtpu: 0.0.40
codegen_flags: <defaults>
</compile_context>

<pallas_src>
from functools import partial

import jax
import jax.numpy as jnp
from jax.experimental import pallas as pl
from jax.experimental.pallas import tpu as pltpu


def _bifpn_concat_kernel(w_ref, x0_ref, x1_ref, o_ref, *, c1):
    """One (batch-tile, spatial-tile) step of the weighted channel concat.

    w_ref:  SMEM (2,)  normalized fusion weights [w0, w1] (f32)
    x0_ref: VMEM (TB, C1, TN)
    x1_ref: VMEM (TB, C2, TN)
    o_ref:  VMEM (TB, C1 + C2, TN)
            rows [0, C1) <- w0 * x0, rows [C1, C1+C2) <- w1 * x1
    """
    # Cast the scalar weights once to the compute/output dtype (bf16 inputs stay
    # bf16 end-to-end: halves VALU work and vreg live ranges for large tiles).
    w0 = w_ref[0].astype(o_ref.dtype)
    w1 = w_ref[1].astype(o_ref.dtype)
    o_ref[:, :c1, :] = (x0_ref[...] * w0).astype(o_ref.dtype)
    o_ref[:, c1:, :] = (x1_ref[...] * w1).astype(o_ref.dtype)


def _round_up(x, m):
    return ((x + m - 1) // m) * m


def _plan_tiles(B, C1, C2, N, itemsize):
    """Choose (tb, tn, vmem_limit_bytes).

    tb: batch elements per step, tn: lane-tile size over the flattened H*W axis.
    Footprint accounting is sublane-padding aware and covers double buffering of
    the two input blocks plus the output block.
    """
    # Sublane pack per dtype: 8 (f32/i32), 16 (bf16/f16), 32 (int8/fp8).
    pack = max(8, 32 // itemsize)
    c_rows_padded = (_round_up(C1, pack) + _round_up(C2, pack)
                     + _round_up(C1 + C2, pack))
    # Bytes per lane column per batch element, double-buffered (x2).
    bytes_per_lane = 2 * c_rows_padded * itemsize

    BUDGET = 24 * 1024 * 1024          # double-buffered in+out block budget
    MIN_STEPS = 4                      # >=2 for v7x megacore, >=4 for pipelining

    # --- lane tile: as large as the budget allows (no arbitrary cap) ---
    max_tn_lanes = max(1, BUDGET // bytes_per_lane)
    if max_tn_lanes >= N:
        tn = N                          # full spatial extent in one tile
    else:
        tn = max(128, (max_tn_lanes // 128) * 128)
        tn = min(tn, N)                 # pathological very-wide-channel guard
        # NOTE: for absurdly wide channel counts a channel-tile grid axis would
        # be the proper fallback; the explicit vmem_limit below keeps this case
        # compiling instead.

    # --- batch tile: raise per-step bytes when H*W alone is too small ---
    tb = 1
    per_step_bytes = bytes_per_lane * tn
    if tn == N and B > 1:
        tb = int(min(B, max(1, BUDGET // per_step_bytes)))

    def _steps(tb_, tn_):
        return pl.cdiv(B, tb_) * pl.cdiv(N, tn_)

    # --- guarantee enough grid steps for megacore sharding / pipeline overlap ---
    while _steps(tb, tn) < MIN_STEPS:
        if tb > 1:
            tb = max(1, tb // 2)
            continue
        if tn > 128:
            new_tn = max(128, ((tn // 2) // 128) * 128)
            if new_tn < tn:
                tn = new_tn
                continue
        break                           # cannot split further (tiny input)

    footprint = bytes_per_lane * tn * tb
    vmem_limit = int(max(32 * 1024 * 1024, footprint + 4 * 1024 * 1024))
    return int(tb), int(tn), vmem_limit


def concat_bifpn_forward(xs, w, epsilon=1e-4):
    """Concat_BiFPN.forward for two inputs (dimension=1, channel concat).

    xs: [x0, x1] with x0 (B, C1, H, W) and x1 (B, C2, H, W), same B/H/W/dtype.
    w:  (3,) learnable fusion weights. Matching the PyTorch module, only
        w[0], w[1] multiply the inputs while the normalization uses sum(w[0:3]).
    Returns (B, C1 + C2, H, W).
    """
    x0, x1 = xs
    B, C1, H, W = x0.shape
    B2, C2, H2, W2 = x1.shape
    assert (B, H, W) == (B2, H2, W2), "BiFPN inputs must share batch/spatial dims"
    assert x0.dtype == x1.dtype, "BiFPN inputs must share a dtype"

    # Normalized fusion weights (scalars), computed once in f32.
    weight = (w.astype(jnp.float32) /
              (jnp.sum(w.astype(jnp.float32)) + jnp.float32(epsilon)))[:2]

    # Free reshapes: collapse contiguous H*W into a lane-dense last axis.
    N = H * W
    x0r = x0.reshape(B, C1, N)
    x1r = x1.reshape(B, C2, N)
    c_out = C1 + C2
    itemsize = jnp.dtype(x0.dtype).itemsize

    tb, tn, vmem_limit = _plan_tiles(B, C1, C2, N, itemsize)
    grid = (pl.cdiv(B, tb), pl.cdiv(N, tn))

    total_elems = B * c_out * N
    in_bytes = total_elems * itemsize          # x0 + x1 reads
    bytes_accessed = 2 * in_bytes              # reads + output write

    out = pl.pallas_call(
        partial(_bifpn_concat_kernel, c1=C1),
        out_shape=jax.ShapeDtypeStruct((B, c_out, N), x0.dtype),
        grid=grid,
        in_specs=[
            # Two fusion scalars live in SMEM, resident for the whole grid.
            pl.BlockSpec(memory_space=pltpu.MemorySpace.SMEM),
            pl.BlockSpec((tb, C1, tn), lambda b, n: (b, 0, n)),
            pl.BlockSpec((tb, C2, tn), lambda b, n: (b, 0, n)),
        ],
        out_specs=pl.BlockSpec((tb, c_out, tn), lambda b, n: (b, 0, n)),
        compiler_params=pltpu.CompilerParams(
            dimension_semantics=("parallel", "parallel"),
            vmem_limit_bytes=vmem_limit,
        ),
        cost_estimate=pl.CostEstimate(
            flops=total_elems,
            transcendentals=0,
            bytes_accessed=bytes_accessed,
        ),
    )(weight, x0r, x1r)

    # Free reshape back to NCHW.
    return out.reshape(B, c_out, H, W)


if __name__ == "__main__":
    # Small shapes consistent with the module: two NCHW feature maps.
    B, C1, C2, H, W = 2, 4, 4, 16, 16

    key = jax.random.PRNGKey(0)
    k0, k1, kw = jax.random.split(key, 3)
    x0 = jax.random.normal(k0, (B, C1, H, W), dtype=jnp.float32)
    x1 = jax.random.normal(k1, (B, C2, H, W), dtype=jnp.float32)
    # Module initializes w = ones(3); perturb a bit so the math is exercised.
    w = 1.0 + 0.1 * jax.random.normal(kw, (3,), dtype=jnp.float32)

    out = concat_bifpn_forward([x0, x1], w)
    jax.block_until_ready(out)

    # Pure-JAX reference of the exact PyTorch forward.
    eps = 1e-4
    weight = w / (jnp.sum(w) + eps)
    ref = jnp.concatenate([weight[0] * x0, weight[1] * x1], axis=1)

    assert out.shape == (B, C1 + C2, H, W)
    assert jnp.allclose(out, ref, atol=1e-6, rtol=1e-6)

    print("KERNEL_OK")
</pallas_src>

<mosaic_0001>
module attributes {stable_mosaic.version = 11 : i64} {
  func.func @_bifpn_concat_kernel(%arg0: i32, %arg1: i32, %arg2: memref<2xf32, #tpu.memory_space<smem>>, %arg3: memref<1x4x128xf32, #tpu.memory_space<vmem>>, %arg4: memref<1x4x128xf32, #tpu.memory_space<vmem>>, %arg5: memref<1x8x128xf32, #tpu.memory_space<vmem>>) attributes {dimension_semantics = [#tpu.dimension_semantics<parallel>, #tpu.dimension_semantics<parallel>], iteration_bounds = array<i64: 2, 2>, scalar_prefetch = 0 : i64, scratch_operands = 0 : i64, tpu.core_type = #tpu.core_type<tc>, window_params = [{transform_indices = @transform_0, window_bounds = array<i64: 2>}, {transform_indices = @transform_1, window_bounds = array<i64: 1, 4, 128>}, {transform_indices = @transform_2, window_bounds = array<i64: 1, 4, 128>}, {transform_indices = @transform_3, window_bounds = array<i64: 1, 8, 128>}]} {
    %c0 = arith.constant 0 : index
    %0 = memref.load %arg2[%c0] : memref<2xf32, #tpu.memory_space<smem>>
    %c1 = arith.constant 1 : index
    %1 = memref.load %arg2[%c1] : memref<2xf32, #tpu.memory_space<smem>>
    %c0_0 = arith.constant 0 : index
    %c0_1 = arith.constant 0 : index
    %c0_2 = arith.constant 0 : index
    %2 = vector.load %arg3[%c0_0, %c0_1, %c0_2] : memref<1x4x128xf32, #tpu.memory_space<vmem>>, vector<1x4x128xf32>
    %3 = vector.broadcast %0 : f32 to vector<1x4x128xf32>
    %4 = arith.mulf %2, %3 : vector<1x4x128xf32>
    %c0_3 = arith.constant 0 : index
    %c0_4 = arith.constant 0 : index
    %c0_5 = arith.constant 0 : index
    %5 = vector.load %arg5[%c0_3, %c0_4, %c0_5] : memref<1x8x128xf32, #tpu.memory_space<vmem>>, vector<1x4x128xf32>
    tpu.vector_store %arg5[%c0_3, %c0_4, %c0_5], %4 {strides = array<i32>} : memref<1x8x128xf32, #tpu.memory_space<vmem>>, vector<1x4x128xf32>,
    %c0_6 = arith.constant 0 : index
    %c0_7 = arith.constant 0 : index
    %c0_8 = arith.constant 0 : index
    %6 = vector.load %arg4[%c0_6, %c0_7, %c0_8] : memref<1x4x128xf32, #tpu.memory_space<vmem>>, vector<1x4x128xf32>
    %7 = vector.broadcast %1 : f32 to vector<1x4x128xf32>
    %8 = arith.mulf %6, %7 : vector<1x4x128xf32>
    %c0_9 = arith.constant 0 : index
    %c4 = arith.constant 4 : index
    %c0_10 = arith.constant 0 : index
    %9 = vector.load %arg5[%c0_9, %c4, %c0_10] : memref<1x8x128xf32, #tpu.memory_space<vmem>>, vector<1x4x128xf32>
    tpu.vector_store %arg5[%c0_9, %c4, %c0_10], %8 {strides = array<i32>} : memref<1x8x128xf32, #tpu.memory_space<vmem>>, vector<1x4x128xf32>,
    return
  }
  func.func @transform_0(%arg0: i32, %arg1: i32) -> i32 {
    %c0_i32 = arith.constant 0 : i32
    %c0_i32_0 = arith.constant 0 : i32
    return %c0_i32 : i32
  }
  func.func @transform_1(%arg0: i32, %arg1: i32) -> (i32, i32, i32) {
    %c0_i32 = arith.constant 0 : i32
    %c0_i32_0 = arith.constant 0 : i32
    return %arg0, %c0_i32, %arg1 : i32, i32, i32
  }
  func.func @transform_2(%arg0: i32, %arg1: i32) -> (i32, i32, i32) {
    %c0_i32 = arith.constant 0 : i32
    %c0_i32_0 = arith.constant 0 : i32
    return %arg0, %c0_i32, %arg1 : i32, i32, i32
  }
  func.func @transform_3(%arg0: i32, %arg1: i32) -> (i32, i32, i32) {
    %c0_i32 = arith.constant 0 : i32
    %c0_i32_0 = arith.constant 0 : i32
    return %arg0, %c0_i32, %arg1 : i32, i32, i32
  }
}

</mosaic_0001>

<llo_original>
// kernel: tpu_custom_call.1
$region0: #{tpu_custom_call.1}
  #allocation0 [shape = 'u32[]', space=smem, size = 0x4, offset = 0x4, fixed_abs, tag = 'smem constant byte address 0x4 - core index']
  #allocation1 [shape = 'u32[144,128]{1,0:T(1,128)}', space=vmem, size = 0x12000, scoped, tag = 'internal scratch']
  %s0 = inlined_call_operand.hbm [shape: f32[2], index: 0, kind: input, shape index: {}]
  %s1 = inlined_call_operand.hbm [shape: f32[2,4,256], index: 1, kind: input, shape index: {}]
  %s2 = inlined_call_operand.hbm [shape: f32[2,4,256], index: 2, kind: input, shape index: {}]
  %s3 = inlined_call_operand.hbm [shape: f32[2,8,256], index: 3, kind: output, shape index: {}]
  %s4 = sld [smem:[#allocation0]]
  $region57: #{tpu_custom_call.1} parent=0
    _
  %s6 = ssub.s32 1, %s4
  %s7 = scalar_select 0, %s6, %s4
  $region1: #{tpu_custom_call.1} parent=0
    #allocation2 [shape = 'u8[512]{0}', space=smem, size = 0x200, scoped, tag = 'input window, operand 0, single buffered']
    #allocation3 [shape = 's32[2]{0}', space=sflag, size = 0x8, scoped, tag = 'scoped memory for tpu_custom_call.1']
    #allocation4 [shape = 's32[2]{0}', space=sflag, size = 0x8, scoped, tag = 'scoped memory for tpu_custom_call.1']
    #allocation5 [shape = 's32[2]{0}', space=sflag, size = 0x8, scoped, tag = 'scoped memory for tpu_custom_call.1']
    #allocation6 [shape = 'u8[4096]{0}', space=vmem, size = 0x1000, scoped, tag = 'input window, operand 1']
    #allocation7 [shape = 'u8[4096]{0}', space=vmem, size = 0x1000, scoped, tag = 'input window, operand 2']
    #allocation8 [shape = 's32[2]{0}', space=sflag, size = 0x8, scoped, tag = 'scoped memory for tpu_custom_call.1']
    #allocation9 [shape = 'u8[8192]{0}', space=vmem, size = 0x2000, scoped, tag = 'output window, operand 0']
    %8 = vsyncpa [#allocation5], 0
    %9 = vsyncpa [#allocation3], 0
    %s10 = scalar_lea.sflag [#allocation3], 1
    %11 = vsyncpa %s10, 0
    %12 = vsyncpa [#allocation8], 0
    %s13 = scalar_lea.sflag [#allocation8], 1
    %14 = vsyncpa %s13, 0
    %15 = vsyncpa [#allocation4], 0
    %s16 = scalar_lea.sflag [#allocation4], 1
    %17 = vsyncpa %s16, 0
    loop: start=0, step=1, limit=6
    $region2: #{tpu_custom_call.1} parent=1 // loop_pre_header
      _
    $region3: #{tpu_custom_call.1} parent=1 // loop_header
      %s19 = sphi 0, %s23
      %p20 = scmp.ge.s32.totalorder %s19, 6
      %s26 = sphi 0, %s38
      %s27 = sphi 0, %s34
      %s28 = sphi 0, %s26
      %s29 = sphi 0, %s27
      %s30 = sphi 0, %s28
      %s31 = sphi 0, %s29
      %s39 = sphi 0, %s39
      %s41 = sphi 0, %s39
      %s42 = sphi 0, %s41
      %s56 = sphi 0, %s42
      %s64 = sphi 0, %s66
      %s67 = sphi 0, %s64
      %s68 = sphi 0, %s67
      %s84 = sphi 0, %s68
      %s92 = sphi 0, %s94
      %s95 = sphi 0, %s92
      %s96 = sphi 0, %s95
      %s112 = sphi 0, %s96
      %s120 = sphi 0, %s122
      %s123 = sphi 0, %s120
      %s124 = sphi 0, %s123
      %s140 = sphi 0, %s124
    $region4: #{tpu_custom_call.1} parent=1 // loop_header_branch
      %22 = sbr.rel (%p20) target = $region8
    $region5: #{tpu_custom_call.1} parent=1 // loop_body
      %s24 = ssub.s32 %s19, 1
      %s25 = ssub.s32 %s19, 2
      %s32 = sadd.s32 1, %s27
      %p33 = scmp.ge.s32.totalorder %s32, 2
      %s34 = scalar_select %p33, 0, %s32
      %s35 = sadd.s32 1, %s26
      %s36 = scalar_select %p33, %s35, %s26
      %p37 = scmp.ge.s32.totalorder %s36, 2
      %s38 = scalar_select %p37, 0, %s36
      %s40 = sadd.s32 %s39, 1
      %p43 = scmp.eq.s32.totalorder %s19, 3
      %p44 = scmp.ne.s32.totalorder %s39, %s41
      %p45 = scmp.eq.s32.totalorder %s19, 0
      %p46 = por %p44, %p45
      %p47 = scmp.ne.s32.totalorder %s39, %s41
      %p48 = scmp.eq.s32.totalorder %s24, 3
      %p49 = por %p47, %p48
      %p50 = scmp.ne.s32.totalorder %s41, %s42
      %p51 = scmp.eq.s32.totalorder %s24, 0
      %p52 = por %p50, %p51
      %p53 = scmp.ne.s32.totalorder %s41, %s42
      %p54 = scmp.eq.s32.totalorder %s25, 3
      %p55 = por %p53, %p54
      %p57 = scmp.ne.s32.totalorder %s42, %s56
      %p58 = scmp.eq.s32.totalorder %s25, 0
      %p59 = por %p57, %p58
      %s60 = ssub.s32 %s26, %s38
      %s61 = ssub.s32 %s27, %s34
      %s62 = sor.u32 %s60, %s61
      %p63 = scmp.eq.s32.totalorder %s62, 0
      %s65 = sadd.s32 %s64, 1
      %s66 = scalar_select %p63, %s64, %s65
      %p69 = pneg %p63
      %p70 = scmp.eq.s32.totalorder %s19, 3
      %p71 = por %p69, %p70
      %p72 = scmp.ne.s32.totalorder %s64, %s67
      %p73 = scmp.eq.s32.totalorder %s19, 0
      %p74 = por %p72, %p73
      %p75 = scmp.ne.s32.totalorder %s64, %s67
      %p76 = scmp.eq.s32.totalorder %s24, 3
      %p77 = por %p75, %p76
      %p78 = scmp.ne.s32.totalorder %s67, %s68
      %p79 = scmp.eq.s32.totalorder %s24, 0
      %p80 = por %p78, %p79
      %p81 = scmp.ne.s32.totalorder %s67, %s68
      %p82 = scmp.eq.s32.totalorder %s25, 3
      %p83 = por %p81, %p82
      %p85 = scmp.ne.s32.totalorder %s68, %s84
      %p86 = scmp.eq.s32.totalorder %s25, 0
      %p87 = por %p85, %p86
      %s88 = ssub.s32 %s26, %s38
      %s89 = ssub.s32 %s27, %s34
      %s90 = sor.u32 %s88, %s89
      %p91 = scmp.eq.s32.totalorder %s90, 0
      %s93 = sadd.s32 %s92, 1
      %s94 = scalar_select %p91, %s92, %s93
      %p97 = pneg %p91
      %p98 = scmp.eq.s32.totalorder %s19, 3
      %p99 = por %p97, %p98
      %p100 = scmp.ne.s32.totalorder %s92, %s95
      %p101 = scmp.eq.s32.totalorder %s19, 0
      %p102 = por %p100, %p101
      %p103 = scmp.ne.s32.totalorder %s92, %s95
      %p104 = scmp.eq.s32.totalorder %s24, 3
      %p105 = por %p103, %p104
      %p106 = scmp.ne.s32.totalorder %s95, %s96
      %p107 = scmp.eq.s32.totalorder %s24, 0
      %p108 = por %p106, %p107
      %p109 = scmp.ne.s32.totalorder %s95, %s96
      %p110 = scmp.eq.s32.totalorder %s25, 3
      %p111 = por %p109, %p110
      %p113 = scmp.ne.s32.totalorder %s96, %s112
      %p114 = scmp.eq.s32.totalorder %s25, 0
      %p115 = por %p113, %p114
      %s116 = ssub.s32 %s26, %s38
      %s117 = ssub.s32 %s27, %s34
      %s118 = sor.u32 %s116, %s117
      %p119 = scmp.eq.s32.totalorder %s118, 0
      %s121 = sadd.s32 %s120, 1
      %s122 = scalar_select %p119, %s120, %s121
      %p125 = pneg %p119
      %p126 = scmp.eq.s32.totalorder %s19, 3
      %p127 = por %p125, %p126
      %p128 = scmp.ne.s32.totalorder %s120, %s123
      %p129 = scmp.eq.s32.totalorder %s19, 0
      %p130 = por %p128, %p129
      %p131 = scmp.ne.s32.totalorder %s120, %s123
      %p132 = scmp.eq.s32.totalorder %s24, 3
      %p133 = por %p131, %p132
      %p134 = scmp.ne.s32.totalorder %s123, %s124
      %p135 = scmp.eq.s32.totalorder %s24, 0
      %p136 = por %p134, %p135
      %p137 = scmp.ne.s32.totalorder %s123, %s124
      %p138 = scmp.eq.s32.totalorder %s25, 3
      %p139 = por %p137, %p138
      %p141 = scmp.ne.s32.totalorder %s124, %s140
      %p142 = scmp.eq.s32.totalorder %s25, 0
      %p143 = por %p141, %p142
      %p144 = scmp.le.s32.totalorder 1, %s19
      %p145 = scmp.lt.s32.totalorder %s19, 5
      %p146 = pnand %p144, %p145
      %p147 = pneg %p146
      // Predicated region
      $region9: #{tpu_custom_call.1} parent=5 // pred_check
        _
      $region10: #{tpu_custom_call.1} parent=5 // pred_check_branch
        %149 = sbr.rel (%p146) target = $region12
      $region11: #{tpu_custom_call.1} parent=5 // pred_region
        %s150 = ssub.s32 %s19, 1
        // Predicated region
        $region13: #{tpu_custom_call.1} parent=11 // pred_check
          %p151 = pneg %p52
        $region14: #{tpu_custom_call.1} parent=11 // pred_check_branch
          %153 = sbr.rel (%p151) target = $region16
        $region15: #{tpu_custom_call.1} parent=11 // pred_region
          %s155 = ssub.s32 16, 16
          %156 = vsyncadd [#allocation5], %s155
          %159 = dma.hbm_to_smem %s0, 16, [#allocation2], [#allocation5]
        $region16: #{tpu_custom_call.1} parent=11 // pred_fallthru
          _
      $region12: #{tpu_custom_call.1} parent=5 // pred_fallthru
        _
      %p160 = scmp.lt.s32.totalorder %s19, 4
      // Predicated region
      $region17: #{tpu_custom_call.1} parent=5 // pred_check
        %p161 = pneg %p160
      $region18: #{tpu_custom_call.1} parent=5 // pred_check_branch
        %163 = sbr.rel (%p161) target = $region20
      $region19: #{tpu_custom_call.1} parent=5 // pred_region
        // Predicated region
        $region21: #{tpu_custom_call.1} parent=19 // pred_check
          %p164 = pneg %p74
        $region22: #{tpu_custom_call.1} parent=19 // pred_check_branch
          %166 = sbr.rel (%p164) target = $region24
        $region23: #{tpu_custom_call.1} parent=19 // pred_region
          %s167 = sand.u32 %s64, 1
          %s168 = scalar_lea.sflag [#allocation3], %s167
          %s169 = sand.u32 %s64, 1
          %s170 = smul.addr %s169, 4
          %s171 = scalar_lea.vmem [#allocation6], %s170
          %s173 = ssub.s32 64, 64
          %174 = vsyncadd %s168, %s173
          %s175 = smul.addr %s26, 2
          %s176 = sadd.s32 %s27, %s175
          %s177 = smul.addr %s176, 64
          %s178 = scalar_lea.hbm %s1, %s177
          %s180 = sshll.u32 %s171, 4
          %s181 = int_to_ptr.vmem [resolvable:$true] %s180
          %183 = dma.hbm_to_vmem [thread:$0]  %s178, 64, %s181, %s168
        $region24: #{tpu_custom_call.1} parent=19 // pred_fallthru
          _
        // Predicated region
        $region25: #{tpu_custom_call.1} parent=19 // pred_check
          %p184 = pneg %p102
        $region26: #{tpu_custom_call.1} parent=19 // pred_check_branch
          %186 = sbr.rel (%p184) target = $region28
        $region27: #{tpu_custom_call.1} parent=19 // pred_region
          %s187 = sand.u32 %s92, 1
          %s188 = scalar_lea.sflag [#allocation8], %s187
          %s189 = sand.u32 %s92, 1
          %s190 = smul.addr %s189, 4
          %s191 = scalar_lea.vmem [#allocation7], %s190
          %s193 = ssub.s32 64, 64
          %194 = vsyncadd %s188, %s193
          %s195 = smul.addr %s26, 2
          %s196 = sadd.s32 %s27, %s195
          %s197 = smul.addr %s196, 64
          %s198 = scalar_lea.hbm %s2, %s197
          %s200 = sshll.u32 %s191, 4
          %s201 = int_to_ptr.vmem [resolvable:$true] %s200
          %203 = dma.hbm_to_vmem [thread:$0]  %s198, 64, %s201, %s188
        $region28: #{tpu_custom_call.1} parent=19 // pred_fallthru
          _
      $region20: #{tpu_custom_call.1} parent=5 // pred_fallthru
        _
      %p204 = scmp.le.s32.totalorder 1, %s19
      %p205 = scmp.lt.s32.totalorder %s19, 5
      %p206 = pnand %p204, %p205
      %p207 = pneg %p206
      // Predicated region
      $region29: #{tpu_custom_call.1} parent=5 // pred_check
        _
      $region30: #{tpu_custom_call.1} parent=5 // pred_check_branch
        %209 = sbr.rel (%p206) target = $region32
      $region31: #{tpu_custom_call.1} parent=5 // pred_region
        %s210 = ssub.s32 %s19, 1
        // Predicated region
        $region33: #{tpu_custom_call.1} parent=31 // pred_check
          %p211 = pneg %p52
        $region34: #{tpu_custom_call.1} parent=31 // pred_check_branch
          %213 = sbr.rel (%p211) target = $region36
        $region35: #{tpu_custom_call.1} parent=31 // pred_region
          %214 = dma.done [#allocation5], 16
        $region36: #{tpu_custom_call.1} parent=31 // pred_fallthru
          _
        %s215 = sand.u32 %s67, 1
        %s216 = scalar_lea.sflag [#allocation3], %s215
        %s217 = sand.u32 %s67, 1
        %s218 = smul.addr %s217, 4
        %s219 = scalar_lea.vmem [#allocation6], %s218
        // Predicated region
        $region37: #{tpu_custom_call.1} parent=31 // pred_check
          %p220 = pneg %p80
        $region38: #{tpu_custom_call.1} parent=31 // pred_check_branch
          %222 = sbr.rel (%p220) target = $region40
        $region39: #{tpu_custom_call.1} parent=31 // pred_region
          %223 = dma.done %s216, 64
        $region40: #{tpu_custom_call.1} parent=31 // pred_fallthru
          _
        %s224 = sand.u32 %s95, 1
        %s225 = scalar_lea.sflag [#allocation8], %s224
        %s226 = sand.u32 %s95, 1
        %s227 = smul.addr %s226, 4
        %s228 = scalar_lea.vmem [#allocation7], %s227
        // Predicated region
        $region41: #{tpu_custom_call.1} parent=31 // pred_check
          %p229 = pneg %p108
        $region42: #{tpu_custom_call.1} parent=31 // pred_check_branch
          %231 = sbr.rel (%p229) target = $region44
        $region43: #{tpu_custom_call.1} parent=31 // pred_region
          %232 = dma.done %s225, 64
        $region44: #{tpu_custom_call.1} parent=31 // pred_fallthru
          _
        %233 = sfence
        %p234 = pneg %p52
        %p235 = pneg %p49
        %s236 = sand.u32 %s67, 1
        %s237 = scalar_lea.sflag [#allocation3], %s236
        %s238 = sand.u32 %s67, 1
        %s239 = smul.addr %s238, 4
        %s240 = scalar_lea.vmem [#allocation6], %s239
        %p241 = pneg %p80
        %p242 = pneg %p77
        %s243 = sand.u32 %s95, 1
        %s244 = scalar_lea.sflag [#allocation8], %s243
        %s245 = sand.u32 %s95, 1
        %s246 = smul.addr %s245, 4
        %s247 = scalar_lea.vmem [#allocation7], %s246
        %p248 = pneg %p108
        %p249 = pneg %p105
        %p250 = pneg %p136
        %p251 = pneg %p133
        %s252 = sand.u32 %s123, 1
        %s253 = scalar_lea.sflag [#allocation4], %s252
        %s254 = sand.u32 %s123, 1
        %s255 = smul.addr %s254, 8
        %s256 = scalar_lea.vmem [#allocation9], %s255
        %s257 = sld [smem:[#allocation2]]
        %s258 = sld [smem:[#allocation2 + $0x1]]
        %v259 = vld [vmem:[%s219] sm:$0xf]
        %v260 = vstv %s257
        %v261 = vmul.f32 %v259, %v260
        %262 = vst [vmem:[%s256] sm:$0xf] %v261
        %v263 = vld [vmem:[%s228] sm:$0xf]
        %v264 = vstv %s258
        %v265 = vmul.f32 %v263, %v264
        %266 = vst [vmem:[%s256 + $0x4] sm:$0xf] %v265
        %s267 = sand.u32 %s123, 1
        %s268 = scalar_lea.sflag [#allocation4], %s267
        %s269 = sand.u32 %s123, 1
        %s270 = smul.addr %s269, 8
        %s271 = scalar_lea.vmem [#allocation9], %s270
        // Predicated region
        $region45: #{tpu_custom_call.1} parent=31 // pred_check
          %p272 = pneg %p133
        $region46: #{tpu_custom_call.1} parent=31 // pred_check_branch
          %274 = sbr.rel (%p272) target = $region48
        $region47: #{tpu_custom_call.1} parent=31 // pred_region
          %s276 = ssub.s32 128, 128
          %277 = vsyncadd %s268, %s276
          %s278 = smul.addr %s28, 2
          %s279 = sadd.s32 %s29, %s278
          %s280 = smul.addr %s279, 128
          %s281 = scalar_lea.hbm %s3, %s280
          %s283 = sshll.u32 %s271, 4
          %s284 = int_to_ptr.vmem [resolvable:$true] %s283
          %286 = dma.vmem_to_hbm [thread:$0]  %s284, 128, %s281, %s268
        $region48: #{tpu_custom_call.1} parent=31 // pred_fallthru
          _
      $region32: #{tpu_custom_call.1} parent=5 // pred_fallthru
        _
      %p287 = scmp.le.s32.totalorder 2, %s19
      // Predicated region
      $region49: #{tpu_custom_call.1} parent=5 // pred_check
        %p288 = pneg %p287
      $region50: #{tpu_custom_call.1} parent=5 // pred_check_branch
        %290 = sbr.rel (%p288) target = $region52
      $region51: #{tpu_custom_call.1} parent=5 // pred_region
        %s291 = ssub.s32 %s19, 2
        // Predicated region
        $region53: #{tpu_custom_call.1} parent=51 // pred_check
          %p292 = pneg %p139
        $region54: #{tpu_custom_call.1} parent=51 // pred_check_branch
          %294 = sbr.rel (%p292) target = $region56
        $region55: #{tpu_custom_call.1} parent=51 // pred_region
          %s295 = sand.u32 %s124, 1
          %s296 = scalar_lea.sflag [#allocation4], %s295
          %s297 = sand.u32 %s124, 1
          %s298 = smul.addr %s297, 8
          %s299 = scalar_lea.vmem [#allocation9], %s298
          %300 = dma.done %s296, 128
        $region56: #{tpu_custom_call.1} parent=51 // pred_fallthru
          _
      $region52: #{tpu_custom_call.1} parent=5 // pred_fallthru
        _
    $region6: #{tpu_custom_call.1} parent=1 // loop_footer
      %s23 = sadd.s32 1, %s19
    $region7: #{tpu_custom_call.1} parent=1 // loop_footer_branch
      %18 = sbr.rel target = $region3
    $region8: #{tpu_custom_call.1} parent=1 // loop_exit
      _
    %301 = vsyncpa [#allocation3], 1
    %s302 = scalar_lea.sflag [#allocation3], 1
    %303 = vsyncpa %s302, 1
    %304 = vsyncpa [#allocation8], 1
    %s305 = scalar_lea.sflag [#allocation8], 1
    %306 = vsyncpa %s305, 1
    %307 = vsyncpa [#allocation4], 1
    %s308 = scalar_lea.sflag [#allocation4], 1
    %309 = vsyncpa %s308, 1
    %310 = vsyncpa [#allocation5], 1
    %s311 = scalar_lea.sflag [#allocation5], 1
    %312 = vsyncpa %s311, 1

</llo_original>
